<compile_context>
chip_gen: v7x
topology: tpu7x:2x2x1
jax: 0.10.0
libtpu: 0.0.40
codegen_flags: <defaults>
</compile_context>

<pallas_src>
import functools

import jax
import jax.numpy as jnp
from jax.experimental import pallas as pl
from jax.experimental.pallas import tpu as pltpu

NOISE_DIM = 100
EMBED_DIM = 10
IN_DIM = NOISE_DIM + EMBED_DIM      # 110 (logical K of the first Linear)
K_PAD = 128                         # lane-aligned K for the first matmul
HID_DIM = 256
OUT_DIM = 784                       # 28 * 28
NUM_CLASSES = 10


def _round_up(x, m):
    return (x + m - 1) // m * m


def generator_mlp_kernel(noise_ref, lbias_ref, w1_ref, w2_ref, b2_ref, o_ref):
    # noise_ref: (TB, 128)  bf16   zero-padded noise tile
    # lbias_ref: (TB, 256)  f32    per-row bias = b1 + embed[label] @ W1_label
    # w1_ref:    (128, 256) bf16   noise part of W1, zero-padded on K
    # w2_ref:    (256, 784) bf16
    # b2_ref:    (1, 784)   f32
    # o_ref:     (TB, 784)  f32
    h = jnp.dot(noise_ref[...], w1_ref[...],
                preferred_element_type=jnp.float32)           # MXU, f32 acc
    h = jnp.maximum(h + lbias_ref[...], 0.0)                  # bias + ReLU (f32)
    y = jnp.dot(h.astype(jnp.bfloat16), w2_ref[...],
                preferred_element_type=jnp.float32)           # MXU, f32 acc
    o_ref[...] = jnp.tanh(y + b2_ref[...])                    # bias + Tanh (f32)


def init_params(key):
    """Deterministic parameter init (shapes match the PyTorch module).

    NOTE: scales do not reproduce torch's default kaiming-uniform /
    nn.Embedding init exactly; load real weights for bit parity.
    """
    k_emb, k_w1, k_b1, k_w2, k_b2 = jax.random.split(key, 5)
    return {
        # nn.Embedding(10, 10)
        "embed": jax.random.normal(k_emb, (NUM_CLASSES, EMBED_DIM), jnp.float32),
        # nn.Linear(110, 256) — stored transposed (in, out) for x @ W
        "w1": jax.random.normal(k_w1, (IN_DIM, HID_DIM), jnp.float32)
              * (1.0 / jnp.sqrt(IN_DIM)),
        "b1": jax.random.normal(k_b1, (1, HID_DIM), jnp.float32) * 0.01,
        # nn.Linear(256, 784)
        "w2": jax.random.normal(k_w2, (HID_DIM, OUT_DIM), jnp.float32)
              * (1.0 / jnp.sqrt(HID_DIM)),
        "b2": jax.random.normal(k_b2, (1, OUT_DIM), jnp.float32) * 0.01,
    }


def prepare_params(params):
    """One-time prep: fold label embedding into a bias table, cast to bf16."""
    w1 = params["w1"]                                           # (110, 256) f32
    # Per-class first-layer bias: b1 + embed[c] @ W1[100:110, :]
    label_bias = params["embed"] @ w1[NOISE_DIM:, :] + params["b1"]   # (10, 256)
    # Noise part of W1, zero-padded 100 -> 128 rows for a lane-aligned K.
    w1_noise = jnp.zeros((K_PAD, HID_DIM), jnp.float32).at[:NOISE_DIM].set(
        w1[:NOISE_DIM, :])
    return {
        "w1": w1_noise.astype(jnp.bfloat16),                    # (128, 256) bf16
        "label_bias": label_bias.astype(jnp.float32),           # (10, 256)  f32
        "w2": params["w2"].astype(jnp.bfloat16),                # (256, 784) bf16
        "b2": params["b2"].astype(jnp.float32),                 # (1, 784)   f32
    }


def digit_generator_forward(prep, noise, labels, *, tb=256):
    """noise: (B, 100) f32, labels: (B,) int32 -> (B, 1, 28, 28) f32."""
    B = noise.shape[0]
    TB = min(tb, _round_up(B, 8))          # batch tile (multiple of 8 sublanes)
    B_pad = _round_up(B, TB)
    num_tiles = B_pad // TB

    # Glue (plain JAX): pad noise to (B_pad, 128) bf16; gather per-row bias.
    noise_pad = jnp.zeros((B_pad, K_PAD), jnp.bfloat16)
    noise_pad = noise_pad.at[:B, :NOISE_DIM].set(noise.astype(jnp.bfloat16))
    labels_pad = jnp.zeros((B_pad,), labels.dtype).at[:B].set(labels)
    lbias = jnp.take(prep["label_bias"], labels_pad, axis=0)    # (B_pad, 256)

    flops = 2 * B_pad * (K_PAD * HID_DIM + HID_DIM * OUT_DIM)
    bytes_accessed = (
        noise_pad.size * 2 + lbias.size * 4
        + prep["w1"].size * 2 + prep["w2"].size * 2 + prep["b2"].size * 4
        + B_pad * OUT_DIM * 4)

    img_flat = pl.pallas_call(
        generator_mlp_kernel,
        out_shape=jax.ShapeDtypeStruct((B_pad, OUT_DIM), jnp.float32),
        grid=(num_tiles,),
        in_specs=[
            pl.BlockSpec((TB, K_PAD), lambda i: (i, 0)),        # noise tile
            pl.BlockSpec((TB, HID_DIM), lambda i: (i, 0)),      # per-row bias tile
            pl.BlockSpec((K_PAD, HID_DIM), lambda i: (0, 0)),   # W1 (resident)
            pl.BlockSpec((HID_DIM, OUT_DIM), lambda i: (0, 0)), # W2 (resident)
            pl.BlockSpec((1, OUT_DIM), lambda i: (0, 0)),       # b2 (resident)
        ],
        out_specs=pl.BlockSpec((TB, OUT_DIM), lambda i: (i, 0)),
        compiler_params=pltpu.CompilerParams(
            dimension_semantics=("parallel",)),                 # both TCs on v7x
        cost_estimate=pl.CostEstimate(
            flops=flops,
            transcendentals=B_pad * OUT_DIM,
            bytes_accessed=bytes_accessed),
    )(noise_pad, lbias, prep["w1"], prep["w2"], prep["b2"])

    # PyTorch: img.view(-1, 1, 28, 28); drop batch padding.
    return img_flat[:B].reshape(B, 1, 28, 28)


def _reference_forward(params, noise, labels):
    """Pure-JAX f32 reference matching the PyTorch forward."""
    emb = jnp.take(params["embed"], labels, axis=0)
    x = jnp.concatenate([noise, emb], axis=1)
    h = jnp.maximum(x @ params["w1"] + params["b1"], 0.0)
    y = jnp.tanh(h @ params["w2"] + params["b2"])
    return y.reshape(-1, 1, 28, 28)


if __name__ == "__main__":
    key = jax.random.PRNGKey(0)
    k_params, k_noise, k_labels = jax.random.split(key, 3)

    params = init_params(k_params)
    prep = prepare_params(params)

    B = 4
    noise = jax.random.normal(k_noise, (B, NOISE_DIM), jnp.float32)
    labels = jax.random.randint(k_labels, (B,), 0, NUM_CLASSES, jnp.int32)

    fwd = jax.jit(functools.partial(digit_generator_forward, tb=256))
    img = fwd(prep, noise, labels)
    jax.block_until_ready(img)

    assert img.shape == (B, 1, 28, 28), img.shape
    assert img.dtype == jnp.float32
    # Tanh output must be bounded.
    assert bool(jnp.all(jnp.abs(img) <= 1.0))
    # Numerical check vs f32 reference (bf16 MXU operands -> loose tolerance).
    ref = _reference_forward(params, noise, labels)
    assert bool(jnp.max(jnp.abs(img - ref)) < 6e-2), float(jnp.max(jnp.abs(img - ref)))

    print("KERNEL_OK")
</pallas_src>

<mosaic_0001>
module attributes {stable_mosaic.version = 11 : i64} {
  func.func @generator_mlp_kernel(%arg0: i32, %arg1: memref<8x128xbf16, #tpu.memory_space<vmem>>, %arg2: memref<8x256xf32, #tpu.memory_space<vmem>>, %arg3: memref<128x256xbf16, #tpu.memory_space<vmem>>, %arg4: memref<256x784xbf16, #tpu.memory_space<vmem>>, %arg5: memref<1x784xf32, #tpu.memory_space<vmem>>, %arg6: memref<8x784xf32, #tpu.memory_space<vmem>>) attributes {dimension_semantics = [#tpu.dimension_semantics<parallel>], iteration_bounds = array<i64: 1>, scalar_prefetch = 0 : i64, scratch_operands = 0 : i64, tpu.core_type = #tpu.core_type<tc>, window_params = [{transform_indices = @transform_0, window_bounds = array<i64: 8, 128>}, {transform_indices = @transform_1, window_bounds = array<i64: 8, 256>}, {pipeline_mode = #tpu.pipeline_mode<synchronous>, transform_indices = @transform_2, window_bounds = array<i64: 128, 256>}, {pipeline_mode = #tpu.pipeline_mode<synchronous>, transform_indices = @transform_3, window_bounds = array<i64: 256, 784>}, {pipeline_mode = #tpu.pipeline_mode<synchronous>, transform_indices = @transform_4, window_bounds = array<i64: 1, 784>}, {transform_indices = @transform_5, window_bounds = array<i64: 8, 784>}]} {
    %c0 = arith.constant 0 : index
    %c0_0 = arith.constant 0 : index
    %0 = vector.load %arg1[%c0, %c0_0] : memref<8x128xbf16, #tpu.memory_space<vmem>>, vector<8x128xbf16>
    %c0_1 = arith.constant 0 : index
    %c0_2 = arith.constant 0 : index
    %1 = vector.load %arg3[%c0_1, %c0_2] : memref<128x256xbf16, #tpu.memory_space<vmem>>, vector<128x256xbf16>
    %cst = arith.constant dense<0.000000e+00> : vector<8x256xf32>
    %2 = tpu.matmul %0, %1, %cst {dimension_numbers = #tpu.dot_dimension_numbers<[1], [0], [0], [1], [0, 0, 1, 1], [], []>} : vector<8x128xbf16>, vector<128x256xbf16>, vector<8x256xf32> -> vector<8x256xf32>
    %c0_3 = arith.constant 0 : index
    %c0_4 = arith.constant 0 : index
    %3 = vector.load %arg2[%c0_3, %c0_4] : memref<8x256xf32, #tpu.memory_space<vmem>>, vector<8x256xf32>
    %4 = arith.addf %2, %3 : vector<8x256xf32>
    %cst_5 = arith.constant 0.000000e+00 : f32
    %5 = vector.broadcast %cst_5 : f32 to vector<8x256xf32>
    %6 = arith.maximumf %4, %5 : vector<8x256xf32>
    %7 = arith.truncf %6 : vector<8x256xf32> to vector<8x256xbf16>
    %c0_6 = arith.constant 0 : index
    %c0_7 = arith.constant 0 : index
    %8 = vector.load %arg4[%c0_6, %c0_7] : memref<256x784xbf16, #tpu.memory_space<vmem>>, vector<256x784xbf16>
    %cst_8 = arith.constant dense<0.000000e+00> : vector<8x784xf32>
    %9 = tpu.matmul %7, %8, %cst_8 {dimension_numbers = #tpu.dot_dimension_numbers<[1], [0], [0], [1], [0, 0, 1, 1], [], []>} : vector<8x256xbf16>, vector<256x784xbf16>, vector<8x784xf32> -> vector<8x784xf32>
    %c0_9 = arith.constant 0 : index
    %c0_10 = arith.constant 0 : index
    %10 = vector.load %arg5[%c0_9, %c0_10] : memref<1x784xf32, #tpu.memory_space<vmem>>, vector<1x784xf32>
    %11 = vector.broadcast %10 : vector<1x784xf32> to vector<8x784xf32>
    %12 = arith.addf %9, %11 : vector<8x784xf32>
    %13 = math.tanh %12 : vector<8x784xf32>
    %c0_11 = arith.constant 0 : index
    %c0_12 = arith.constant 0 : index
    %14 = vector.load %arg6[%c0_11, %c0_12] : memref<8x784xf32, #tpu.memory_space<vmem>>, vector<8x784xf32>
    tpu.vector_store %arg6[%c0_11, %c0_12], %13 {strides = array<i32>} : memref<8x784xf32, #tpu.memory_space<vmem>>, vector<8x784xf32>,
    return
  }
  func.func @transform_0(%arg0: i32) -> (i32, i32) {
    %c0_i32 = arith.constant 0 : i32
    %c0_i32_0 = arith.constant 0 : i32
    return %arg0, %c0_i32 : i32, i32
  }
  func.func @transform_1(%arg0: i32) -> (i32, i32) {
    %c0_i32 = arith.constant 0 : i32
    %c0_i32_0 = arith.constant 0 : i32
    return %arg0, %c0_i32 : i32, i32
  }
  func.func @transform_2(%arg0: i32) -> (i32, i32) {
    %c0_i32 = arith.constant 0 : i32
    %c0_i32_0 = arith.constant 0 : i32
    %c0_i32_1 = arith.constant 0 : i32
    return %c0_i32, %c0_i32_0 : i32, i32
  }
  func.func @transform_3(%arg0: i32) -> (i32, i32) {
    %c0_i32 = arith.constant 0 : i32
    %c0_i32_0 = arith.constant 0 : i32
    %c0_i32_1 = arith.constant 0 : i32
    return %c0_i32, %c0_i32_0 : i32, i32
  }
  func.func @transform_4(%arg0: i32) -> (i32, i32) {
    %c0_i32 = arith.constant 0 : i32
    %c0_i32_0 = arith.constant 0 : i32
    %c0_i32_1 = arith.constant 0 : i32
    return %c0_i32, %c0_i32_0 : i32, i32
  }
  func.func @transform_5(%arg0: i32) -> (i32, i32) {
    %c0_i32 = arith.constant 0 : i32
    %c0_i32_0 = arith.constant 0 : i32
    return %arg0, %c0_i32 : i32, i32
  }
}

</mosaic_0001>

<llo_original>
// kernel: digit_generator_forward.1
$region0: #{digit_generator_forward.1}
  #allocation0 [shape = 'u32[]', space=smem, size = 0x4, offset = 0x4, fixed_abs, tag = 'smem constant byte address 0x4 - core index']
  #allocation1 [shape = 'u32[144,128]{1,0:T(1,128)}', space=vmem, size = 0x12000, scoped, tag = 'internal scratch']
  %s0 = inlined_call_operand.vmem [shape: bf16[8,128], index: 0, kind: input, shape index: {}]
  %s1 = inlined_call_operand.vmem [shape: f32[8,256], index: 1, kind: input, shape index: {}]
  %s2 = inlined_call_operand.vmem [shape: bf16[128,256], index: 2, kind: input, shape index: {}]
  %s3 = inlined_call_operand.vmem [shape: bf16[256,784], index: 3, kind: input, shape index: {}]
  %s4 = inlined_call_operand.vmem [shape: f32[1,784], index: 4, kind: input, shape index: {}]
  %s5 = inlined_call_operand.vmem [shape: f32[8,784], index: 5, kind: output, shape index: {}]
  %s6 = sld [smem:[#allocation0]]
  $region30: #{digit_generator_forward.1} parent=0
    _
  %s8 = ssub.s32 1, %s6
  %s9 = scalar_select 0, %s8, %s6
  // Predicated region
  $region2: #{digit_generator_forward.1} parent=0 // pred_check
    _
  $region3: #{digit_generator_forward.1} parent=0 // pred_check_branch
    %11 = sbr.rel (0) target = $region5
  $region4: #{digit_generator_forward.1} parent=0 // pred_region
    _
  $region5: #{digit_generator_forward.1} parent=0 // pred_fallthru
    _
  // Predicated region
  $region6: #{digit_generator_forward.1} parent=0 // pred_check
    _
  $region7: #{digit_generator_forward.1} parent=0 // pred_check_branch
    %13 = sbr.rel (0) target = $region9
  $region8: #{digit_generator_forward.1} parent=0 // pred_region
    _
  $region9: #{digit_generator_forward.1} parent=0 // pred_fallthru
    _
  // Predicated region
  $region10: #{digit_generator_forward.1} parent=0 // pred_check
    _
  $region11: #{digit_generator_forward.1} parent=0 // pred_check_branch
    %15 = sbr.rel (0) target = $region13
  $region12: #{digit_generator_forward.1} parent=0 // pred_region
    _
  $region13: #{digit_generator_forward.1} parent=0 // pred_fallthru
    _
  // Predicated region
  $region14: #{digit_generator_forward.1} parent=0 // pred_check
    _
  $region15: #{digit_generator_forward.1} parent=0 // pred_check_branch
    %17 = sbr.rel (0) target = $region17
  $region16: #{digit_generator_forward.1} parent=0 // pred_region
    _
  $region17: #{digit_generator_forward.1} parent=0 // pred_fallthru
    _
  // Predicated region
  $region18: #{digit_generator_forward.1} parent=0 // pred_check
    _
  $region19: #{digit_generator_forward.1} parent=0 // pred_check_branch
    %19 = sbr.rel (0) target = $region21
  $region20: #{digit_generator_forward.1} parent=0 // pred_region
    _
  $region21: #{digit_generator_forward.1} parent=0 // pred_fallthru
    _
  %v21 = vld [vmem:[%s0] sm:$0xf]
  %v22 = vld [vmem:[%s2] sm:$0xff]
  %v23 = vld [vmem:[%s2 + $0x8] sm:$0xff]
  %v24 = vld [vmem:[%s2 + $0x10] sm:$0xff]
  %v25 = vld [vmem:[%s2 + $0x18] sm:$0xff]
  %v26 = vld [vmem:[%s2 + $0x20] sm:$0xff]
  %v27 = vld [vmem:[%s2 + $0x28] sm:$0xff]
  %v28 = vld [vmem:[%s2 + $0x30] sm:$0xff]
  %v29 = vld [vmem:[%s2 + $0x38] sm:$0xff]
  %v30 = vld [vmem:[%s2 + $0x40] sm:$0xff]
  %v31 = vld [vmem:[%s2 + $0x48] sm:$0xff]
  %v32 = vld [vmem:[%s2 + $0x50] sm:$0xff]
  %v33 = vld [vmem:[%s2 + $0x58] sm:$0xff]
  %v34 = vld [vmem:[%s2 + $0x60] sm:$0xff]
  %v35 = vld [vmem:[%s2 + $0x68] sm:$0xff]
  %v36 = vld [vmem:[%s2 + $0x70] sm:$0xff]
  %v37 = vld [vmem:[%s2 + $0x78] sm:$0xff]
  %v38 = vld [vmem:[%s1] sm:$0xff]
  %v39 = vld [vmem:[%s1 + $0x8] sm:$0xff]
  %v56 = vunpack.c.l.b16 %v22
  %v57 = vunpack.c.h.b16 %v22
  %v58 = vunpack.c.l.b16 %v23
  %v59 = vunpack.c.h.b16 %v23
  %v60 = vunpack.c.l.b16 %v24
  %v61 = vunpack.c.h.b16 %v24
  %v62 = vunpack.c.l.b16 %v25
  %v63 = vunpack.c.h.b16 %v25
  %v64 = vunpack.c.l.b16 %v26
  %v65 = vunpack.c.h.b16 %v26
  %v66 = vunpack.c.l.b16 %v27
  %v67 = vunpack.c.h.b16 %v27
  %v68 = vunpack.c.l.b16 %v28
  %v69 = vunpack.c.h.b16 %v28
  %v70 = vunpack.c.l.b16 %v29
  %v71 = vunpack.c.h.b16 %v29
  %v72 = vunpack.c.l.b16 %v30
  %v73 = vunpack.c.h.b16 %v30
  %v74 = vunpack.c.l.b16 %v31
  %v75 = vunpack.c.h.b16 %v31
  %v76 = vunpack.c.l.b16 %v32
  %v77 = vunpack.c.h.b16 %v32
  %v78 = vunpack.c.l.b16 %v33
  %v79 = vunpack.c.h.b16 %v33
  %v80 = vunpack.c.l.b16 %v34
  %v81 = vunpack.c.h.b16 %v34
  %v82 = vunpack.c.l.b16 %v35
  %v83 = vunpack.c.h.b16 %v35
  %v84 = vunpack.c.l.b16 %v36
  %v85 = vunpack.c.h.b16 %v36
  %v86 = vunpack.c.l.b16 %v37
  %v87 = vunpack.c.h.b16 %v37
  %v88 = vpack.c.b16 %v58, %v56
  %v89 = vpack.c.b16 %v59, %v57
  %v90 = vpack.c.b16 %v62, %v60
  %v91 = vpack.c.b16 %v63, %v61
  %v92 = vpack.c.b16 %v66, %v64
  %v93 = vpack.c.b16 %v67, %v65
  %v94 = vpack.c.b16 %v70, %v68
  %v95 = vpack.c.b16 %v71, %v69
  %v96 = vpack.c.b16 %v74, %v72
  %v97 = vpack.c.b16 %v75, %v73
  %v98 = vpack.c.b16 %v78, %v76
  %v99 = vpack.c.b16 %v79, %v77
  %v100 = vpack.c.b16 %v82, %v80
  %v101 = vpack.c.b16 %v83, %v81
  %v102 = vpack.c.b16 %v86, %v84
  %v103 = vpack.c.b16 %v87, %v85
  %120 = vmatprep.subr.bf16.mxu0 %v89
  %121 = vmatpush1.bf16.msra.mxu0 %v88
  %122 = vmatprep.subr.bf16.mxu0 %v91
  %123 = vmatpush1.bf16.msra.mxu0 %v90
  %124 = vmatprep.subr.bf16.mxu0 %v93
  %125 = vmatpush1.bf16.msra.mxu0 %v92
  %126 = vmatprep.subr.bf16.mxu0 %v95
  %127 = vmatpush1.bf16.msra.mxu0 %v94
  %128 = vmatprep.subr.bf16.mxu0 %v97
  %129 = vmatpush1.bf16.msra.mxu0 %v96
  %130 = vmatprep.subr.bf16.mxu0 %v99
  %131 = vmatpush1.bf16.msra.mxu0 %v98
  %132 = vmatprep.subr.bf16.mxu0 %v101
  %133 = vmatpush1.bf16.msra.mxu0 %v100
  %134 = vmatprep.subr.bf16.mxu0 %v103
  %135 = vmatpush1.bf16.msra.mxu0 %v102
  %136 = vmatprep.subr.bf16.mxu0 0
  %137 = vmatpush1.bf16.msra.mxu0 0
  %138 = vmatprep.subr.bf16.mxu0 0
  %139 = vmatpush1.bf16.msra.mxu0 0
  %140 = vmatprep.subr.bf16.mxu0 0
  %141 = vmatpush1.bf16.msra.mxu0 0
  %142 = vmatprep.subr.bf16.mxu0 0
  %143 = vmatpush1.bf16.msra.mxu0 0
  %144 = vmatprep.subr.bf16.mxu0 0
  %145 = vmatpush1.bf16.msra.mxu0 0
  %146 = vmatprep.subr.bf16.mxu0 0
  %147 = vmatpush1.bf16.msra.mxu0 0
  %148 = vmatprep.subr.bf16.mxu0 0
  %149 = vmatpush1.bf16.msra.mxu0 0
  %150 = vmatprep.subr.bf16.mxu0 0
  %151 = vmatpush1.bf16.msra.mxu0 0
  %152 = vmatprep.mubr.bf16.mxu0 0
  %153 = vmatmul.mubr.bf16.gmra.mrb[0].mxu0 %v21
  %v154 = vpop.f32.mrb[0].mxu0
  %v155 = vadd.f32 %v38, %v154
  %v156 = vpop.f32.mrb[0].mxu0
  %v157 = vadd.f32 %v39, %v156
  %v158 = vpop.f32.mrb[0].mxu0
  %v159 = vpop.f32.mrb[0].mxu0
  %160 = vdwg.mxu0
  %v161 = vmax.f32 %v155, 0.0
  %v162 = vmax.f32 %v157, 0.0
  %v163 = vpack.c.bf16 %v161, %v161
  %v164 = vpack.c.bf16 %v162, %v162
  %v165 = vld [vmem:[%s3] sm:$0xff]
  %v166 = vld [vmem:[%s3 + $0x8] sm:$0xff]
  %v167 = vld [vmem:[%s3 + $0x10] sm:$0xff]
  %v168 = vld [vmem:[%s3 + $0x18] sm:$0xf]
  %v169 = vld [vmem:[%s3 + $0x1c] sm:$0xff]
  %v170 = vld [vmem:[%s3 + $0x24] sm:$0xff]
  %v171 = vld [vmem:[%s3 + $0x2c] sm:$0xff]
  %v172 = vld [vmem:[%s3 + $0x34] sm:$0xf]
  %v173 = vld [vmem:[%s3 + $0x38] sm:$0xff]
  %v174 = vld [vmem:[%s3 + $0x40] sm:$0xff]
  %v175 = vld [vmem:[%s3 + $0x48] sm:$0xff]
  %v176 = vld [vmem:[%s3 + $0x50] sm:$0xf]
  %v177 = vld [vmem:[%s3 + $0x54] sm:$0xff]
  %v178 = vld [vmem:[%s3 + $0x5c] sm:$0xff]
  %v179 = vld [vmem:[%s3 + $0x64] sm:$0xff]
  %v180 = vld [vmem:[%s3 + $0x6c] sm:$0xf]
  %v181 = vld [vmem:[%s3 + $0x70] sm:$0xff]
  %v182 = vld [vmem:[%s3 + $0x78] sm:$0xff]
  %v183 = vld [vmem:[%s3 + $0x80] sm:$0xff]
  %v184 = vld [vmem:[%s3 + $0x88] sm:$0xf]
  %v185 = vld [vmem:[%s3 + $0x8c] sm:$0xff]
  %v186 = vld [vmem:[%s3 + $0x94] sm:$0xff]
  %v187 = vld [vmem:[%s3 + $0x9c] sm:$0xff]
  %v188 = vld [vmem:[%s3 + $0xa4] sm:$0xf]
  %v189 = vld [vmem:[%s3 + $0xa8] sm:$0xff]
  %v190 = vld [vmem:[%s3 + $0xb0] sm:$0xff]
  %v191 = vld [vmem:[%s3 + $0xb8] sm:$0xff]
  %v192 = vld [vmem:[%s3 + $0xc0] sm:$0xf]
  %v193 = vld [vmem:[%s3 + $0xc4] sm:$0xff]
  %v194 = vld [vmem:[%s3 + $0xcc] sm:$0xff]
  %v195 = vld [vmem:[%s3 + $0xd4] sm:$0xff]
  %v196 = vld [vmem:[%s3 + $0xdc] sm:$0xf]
  %v197 = vld [vmem:[%s3 + $0xe0] sm:$0xff]
  %v198 = vld [vmem:[%s3 + $0xe8] sm:$0xff]
  %v199 = vld [vmem:[%s3 + $0xf0] sm:$0xff]
  %v200 = vld [vmem:[%s3 + $0xf8] sm:$0xf]
  %v201 = vld [vmem:[%s3 + $0xfc] sm:$0xff]
  %v202 = vld [vmem:[%s3 + $0x104] sm:$0xff]
  %v203 = vld [vmem:[%s3 + $0x10c] sm:$0xff]
  %v204 = vld [vmem:[%s3 + $0x114] sm:$0xf]
  %v205 = vld [vmem:[%s3 + $0x118] sm:$0xff]
  %v206 = vld [vmem:[%s3 + $0x120] sm:$0xff]
  %v207 = vld [vmem:[%s3 + $0x128] sm:$0xff]
  %v208 = vld [vmem:[%s3 + $0x130] sm:$0xf]
  %v209 = vld [vmem:[%s3 + $0x134] sm:$0xff]
  %v210 = vld [vmem:[%s3 + $0x13c] sm:$0xff]
  %v211 = vld [vmem:[%s3 + $0x144] sm:$0xff]
  %v212 = vld [vmem:[%s3 + $0x14c] sm:$0xf]
  %v213 = vld [vmem:[%s3 + $0x150] sm:$0xff]
  %v214 = vld [vmem:[%s3 + $0x158] sm:$0xff]
  %v215 = vld [vmem:[%s3 + $0x160] sm:$0xff]
  %v216 = vld [vmem:[%s3 + $0x168] sm:$0xf]
  %v217 = vld [vmem:[%s3 + $0x16c] sm:$0xff]
  %v218 = vld [vmem:[%s3 + $0x174] sm:$0xff]
  %v219 = vld [vmem:[%s3 + $0x17c] sm:$0xff]
  %v220 = vld [vmem:[%s3 + $0x184] sm:$0xf]
  %v221 = vld [vmem:[%s3 + $0x188] sm:$0xff]
  %v222 = vld [vmem:[%s3 + $0x190] sm:$0xff]
  %v223 = vld [vmem:[%s3 + $0x198] sm:$0xff]
  %v224 = vld [vmem:[%s3 + $0x1a0] sm:$0xf]
  %v225 = vld [vmem:[%s3 + $0x1a4] sm:$0xff]
  %v226 = vld [vmem:[%s3 + $0x1ac] sm:$0xff]
  %v227 = vld [vmem:[%s3 + $0x1b4] sm:$0xff]
  %v228 = vld [vmem:[%s3 + $0x1bc] sm:$0xf]
  %v229 = vld [vmem:[%s3 + $0x1c0] sm:$0xff]
  %v230 = vld [vmem:[%s3 + $0x1c8] sm:$0xff]
  %v231 = vld [vmem:[%s3 + $0x1d0] sm:$0xff]
  %v232 = vld [vmem:[%s3 + $0x1d8] sm:$0xf]
  %v233 = vld [vmem:[%s3 + $0x1dc] sm:$0xff]
  %v234 = vld [vmem:[%s3 + $0x1e4] sm:$0xff]
  %v235 = vld [vmem:[%s3 + $0x1ec] sm:$0xff]
  %v236 = vld [vmem:[%s3 + $0x1f4] sm:$0xf]
  %v237 = vld [vmem:[%s3 + $0x1f8] sm:$0xff]
  %v238 = vld [vmem:[%s3 + $0x200] sm:$0xff]
  %v239 = vld [vmem:[%s3 + $0x208] sm:$0xff]
  %v240 = vld [vmem:[%s3 + $0x210] sm:$0xf]
  %v241 = vld [vmem:[%s3 + $0x214] sm:$0xff]
  %v242 = vld [vmem:[%s3 + $0x21c] sm:$0xff]
  %v243 = vld [vmem:[%s3 + $0x224] sm:$0xff]
  %v244 = vld [vmem:[%s3 + $0x22c] sm:$0xf]
  %v245 = vld [vmem:[%s3 + $0x230] sm:$0xff]
  %v246 = vld [vmem:[%s3 + $0x238] sm:$0xff]
  %v247 = vld [vmem:[%s3 + $0x240] sm:$0xff]
  %v248 = vld [vmem:[%s3 + $0x248] sm:$0xf]
  %v249 = vld [vmem:[%s3 + $0x24c] sm:$0xff]
  %v250 = vld [vmem:[%s3 + $0x254] sm:$0xff]
  %v251 = vld [vmem:[%s3 + $0x25c] sm:$0xff]
  %v252 = vld [vmem:[%s3 + $0x264] sm:$0xf]
  %v253 = vld [vmem:[%s3 + $0x268] sm:$0xff]
  %v254 = vld [vmem:[%s3 + $0x270] sm:$0xff]
  %v255 = vld [vmem:[%s3 + $0x278] sm:$0xff]
  %v256 = vld [vmem:[%s3 + $0x280] sm:$0xf]
  %v257 = vld [vmem:[%s3 + $0x284] sm:$0xff]
  %v258 = vld [vmem:[%s3 + $0x28c] sm:$0xff]
  %v259 = vld [vmem:[%s3 + $0x294] sm:$0xff]
  %v260 = vld [vmem:[%s3 + $0x29c] sm:$0xf]
  %v261 = vld [vmem:[%s3 + $0x2a0] sm:$0xff]
  %v262 = vld [vmem:[%s3 + $0x2a8] sm:$0xff]
  %v263 = vld [vmem:[%s3 + $0x2b0] sm:$0xff]
  %v264 = vld [vmem:[%s3 + $0x2b8] sm:$0xf]
  %v265 = vld [vmem:[%s3 + $0x2bc] sm:$0xff]
  %v266 = vld [vmem:[%s3 + $0x2c4] sm:$0xff]
  %v267 = vld [vmem:[%s3 + $0x2cc] sm:$0xff]
  %v268 = vld [vmem:[%s3 + $0x2d4] sm:$0xf]
  %v269 = vld [vmem:[%s3 + $0x2d8] sm:$0xff]
  %v270 = vld [vmem:[%s3 + $0x2e0] sm:$0xff]
  %v271 = vld [vmem:[%s3 + $0x2e8] sm:$0xff]
  %v272 = vld [vmem:[%s3 + $0x2f0] sm:$0xf]
  %v273 = vld [vmem:[%s3 + $0x2f4] sm:$0xff]
  %v274 = vld [vmem:[%s3 + $0x2fc] sm:$0xff]
  %v275 = vld [vmem:[%s3 + $0x304] sm:$0xff]
  %v276 = vld [vmem:[%s3 + $0x30c] sm:$0xf]
  %v277 = vld [vmem:[%s3 + $0x310] sm:$0xff]
  %v278 = vld [vmem:[%s3 + $0x318] sm:$0xff]
  %v279 = vld [vmem:[%s3 + $0x320] sm:$0xff]
  %v280 = vld [vmem:[%s3 + $0x328] sm:$0xf]
  %v281 = vld [vmem:[%s3 + $0x32c] sm:$0xff]
  %v282 = vld [vmem:[%s3 + $0x334] sm:$0xff]
  %v283 = vld [vmem:[%s3 + $0x33c] sm:$0xff]
  %v284 = vld [vmem:[%s3 + $0x344] sm:$0xf]
  %v285 = vld [vmem:[%s3 + $0x348] sm:$0xff]
  %v286 = vld [vmem:[%s3 + $0x350] sm:$0xff]
  %v287 = vld [vmem:[%s3 + $0x358] sm:$0xff]
  %v288 = vld [vmem:[%s3 + $0x360] sm:$0xf]
  %v289 = vld [vmem:[%s3 + $0x364] sm:$0xff]
  %v290 = vld [vmem:[%s3 + $0x36c] sm:$0xff]
  %v291 = vld [vmem:[%s3 + $0x374] sm:$0xff]
  %v292 = vld [vmem:[%s3 + $0x37c] sm:$0xf]
  %v293 = vld [vmem:[%s4] sm:$0x7f]
  %v295 = vlaneseq
  %v296 = vshrl.u32 %v295, 7
  %v297 = vsub.s32 0, %v296
  %v298 = vrot.slane %v293, %v297
  %v299 = vlaneseq
  %v300 = vshrl.u32 %v299, 7
  %v301 = vsub.s32 1, %v300
  %v302 = vrot.slane %v293, %v301
  %v303 = vlaneseq
  %v304 = vshrl.u32 %v303, 7
  %v305 = vsub.s32 2, %v304
  %v306 = vrot.slane %v293, %v305
  %v307 = vlaneseq
  %v308 = vshrl.u32 %v307, 7
  %v309 = vsub.s32 3, %v308
  %v310 = vrot.slane %v293, %v309
  %v311 = vlaneseq
  %v312 = vshrl.u32 %v311, 7
  %v313 = vsub.s32 4, %v312
  %v314 = vrot.slane %v293, %v313
  %v315 = vlaneseq
  %v316 = vshrl.u32 %v315, 7
  %v317 = vsub.s32 5, %v316
  %v318 = vrot.slane %v293, %v317
  %v319 = vlaneseq
  %v320 = vshrl.u32 %v319, 7
  %v321 = vsub.s32 6, %v320
  %v322 = vrot.slane %v293, %v321
  %v458 = vunpack.c.l.b16 %v165
  %v459 = vunpack.c.h.b16 %v165
  %v460 = vunpack.c.l.b16 %v166
  %v461 = vunpack.c.h.b16 %v166
  %v462 = vunpack.c.l.b16 %v167
  %v463 = vunpack.c.h.b16 %v167
  %v464 = vunpack.c.l.b16 %v168
  %v465 = vunpack.c.l.b16 %v169
  %v466 = vunpack.c.h.b16 %v169
  %v467 = vunpack.c.l.b16 %v170
  %v468 = vunpack.c.h.b16 %v170
  %v469 = vunpack.c.l.b16 %v171
  %v470 = vunpack.c.h.b16 %v171
  %v471 = vunpack.c.l.b16 %v172
  %v472 = vunpack.c.l.b16 %v173
  %v473 = vunpack.c.h.b16 %v173
  %v474 = vunpack.c.l.b16 %v174
  %v475 = vunpack.c.h.b16 %v174
  %v476 = vunpack.c.l.b16 %v175
  %v477 = vunpack.c.h.b16 %v175
  %v478 = vunpack.c.l.b16 %v176
  %v479 = vunpack.c.l.b16 %v177
  %v480 = vunpack.c.h.b16 %v177
  %v481 = vunpack.c.l.b16 %v178
  %v482 = vunpack.c.h.b16 %v178
  %v483 = vunpack.c.l.b16 %v179
  %v484 = vunpack.c.h.b16 %v179
  %v485 = vunpack.c.l.b16 %v180
  %v486 = vunpack.c.l.b16 %v181
  %v487 = vunpack.c.h.b16 %v181
  %v488 = vunpack.c.l.b16 %v182
  %v489 = vunpack.c.h.b16 %v182
  %v490 = vunpack.c.l.b16 %v183
  %v491 = vunpack.c.h.b16 %v183
  %v492 = vunpack.c.l.b16 %v184
  %v493 = vunpack.c.l.b16 %v185
  %v494 = vunpack.c.h.b16 %v185
  %v495 = vunpack.c.l.b16 %v186
  %v496 = vunpack.c.h.b16 %v186
  %v497 = vunpack.c.l.b16 %v187
  %v498 = vunpack.c.h.b16 %v187
  %v499 = vunpack.c.l.b16 %v188
  %v500 = vunpack.c.l.b16 %v189
  %v501 = vunpack.c.h.b16 %v189
  %v502 = vunpack.c.l.b16 %v190
  %v503 = vunpack.c.h.b16 %v190
  %v504 = vunpack.c.l.b16 %v191
  %v505 = vunpack.c.h.b16 %v191
  %v506 = vunpack.c.l.b16 %v192
  %v507 = vunpack.c.l.b16 %v193
  %v508 = vunpack.c.h.b16 %v193
  %v509 = vunpack.c.l.b16 %v194
  %v510 = vunpack.c.h.b16 %v194
  %v511 = vunpack.c.l.b16 %v195
  %v512 = vunpack.c.h.b16 %v195
  %v513 = vunpack.c.l.b16 %v196
  %v514 = vunpack.c.l.b16 %v197
  %v515 = vunpack.c.h.b16 %v197
  %v516 = vunpack.c.l.b16 %v198
  %v517 = vunpack.c.h.b16 %v198
  %v518 = vunpack.c.l.b16 %v199
  %v519 = vunpack.c.h.b16 %v199
  %v520 = vunpack.c.l.b16 %v200
  %v521 = vunpack.c.l.b16 %v201
  %v522 = vunpack.c.h.b16 %v201
  %v523 = vunpack.c.l.b16 %v202
  %v524 = vunpack.c.h.b16 %v202
  %v525 = vunpack.c.l.b16 %v203
  %v526 = vunpack.c.h.b16 %v203
  %v527 = vunpack.c.l.b16 %v204
  %v528 = vunpack.c.l.b16 %v205
  %v529 = vunpack.c.h.b16 %v205
  %v530 = vunpack.c.l.b16 %v206
  %v531 = vunpack.c.h.b16 %v206
  %v532 = vunpack.c.l.b16 %v207
  %v533 = vunpack.c.h.b16 %v207
  %v534 = vunpack.c.l.b16 %v208
  %v535 = vunpack.c.l.b16 %v209
  %v536 = vunpack.c.h.b16 %v209
  %v537 = vunpack.c.l.b16 %v210
  %v538 = vunpack.c.h.b16 %v210
  %v539 = vunpack.c.l.b16 %v211
  %v540 = vunpack.c.h.b16 %v211
  %v541 = vunpack.c.l.b16 %v212
  %v542 = vunpack.c.l.b16 %v213
  %v543 = vunpack.c.h.b16 %v213
  %v544 = vunpack.c.l.b16 %v214
  %v545 = vunpack.c.h.b16 %v214
  %v546 = vunpack.c.l.b16 %v215
  %v547 = vunpack.c.h.b16 %v215
  %v548 = vunpack.c.l.b16 %v216
  %v549 = vunpack.c.l.b16 %v217
  %v550 = vunpack.c.h.b16 %v217
  %v551 = vunpack.c.l.b16 %v218
  %v552 = vunpack.c.h.b16 %v218
  %v553 = vunpack.c.l.b16 %v219
  %v554 = vunpack.c.h.b16 %v219
  %v555 = vunpack.c.l.b16 %v220
  %v556 = vunpack.c.l.b16 %v221
  %v557 = vunpack.c.h.b16 %v221
  %v558 = vunpack.c.l.b16 %v222
  %v559 = vunpack.c.h.b16 %v222
  %v560 = vunpack.c.l.b16 %v223
  %v561 = vunpack.c.h.b16 %v223
  %v562 = vunpack.c.l.b16 %v224
  %v563 = vunpack.c.l.b16 %v225
  %v564 = vunpack.c.h.b16 %v225
  %v565 = vunpack.c.l.b16 %v226
  %v566 = vunpack.c.h.b16 %v226
  %v567 = vunpack.c.l.b16 %v227
  %v568 = vunpack.c.h.b16 %v227
  %v569 = vunpack.c.l.b16 %v228
  %v570 = vunpack.c.l.b16 %v229
  %v571 = vunpack.c.h.b16 %v229
  %v572 = vunpack.c.l.b16 %v230
  %v573 = vunpack.c.h.b16 %v230
  %v574 = vunpack.c.l.b16 %v231
  %v575 = vunpack.c.h.b16 %v231
  %v576 = vunpack.c.l.b16 %v232
  %v577 = vunpack.c.l.b16 %v233
  %v578 = vunpack.c.h.b16 %v233
  %v579 = vunpack.c.l.b16 %v234
  %v580 = vunpack.c.h.b16 %v234
  %v581 = vunpack.c.l.b16 %v235
  %v582 = vunpack.c.h.b16 %v235
  %v583 = vunpack.c.l.b16 %v236
  %v584 = vunpack.c.l.b16 %v237
  %v585 = vunpack.c.h.b16 %v237
  %v586 = vunpack.c.l.b16 %v238
  %v587 = vunpack.c.h.b16 %v238
  %v588 = vunpack.c.l.b16 %v239
  %v589 = vunpack.c.h.b16 %v239
  %v590 = vunpack.c.l.b16 %v240
  %v591 = vunpack.c.l.b16 %v241
  %v592 = vunpack.c.h.b16 %v241
  %v593 = vunpack.c.l.b16 %v242
  %v594 = vunpack.c.h.b16 %v242
  %v595 = vunpack.c.l.b16 %v243
  %v596 = vunpack.c.h.b16 %v243
  %v597 = vunpack.c.l.b16 %v244
  %v598 = vunpack.c.l.b16 %v245
  %v599 = vunpack.c.h.b16 %v245
  %v600 = vunpack.c.l.b16 %v246
  %v601 = vunpack.c.h.b16 %v246
  %v602 = vunpack.c.l.b16 %v247
  %v603 = vunpack.c.h.b16 %v247
  %v604 = vunpack.c.l.b16 %v248
  %v605 = vunpack.c.l.b16 %v249
  %v606 = vunpack.c.h.b16 %v249
  %v607 = vunpack.c.l.b16 %v250
  %v608 = vunpack.c.h.b16 %v250
  %v609 = vunpack.c.l.b16 %v251
  %v610 = vunpack.c.h.b16 %v251
  %v611 = vunpack.c.l.b16 %v252
  %v612 = vunpack.c.l.b16 %v253
  %v613 = vunpack.c.h.b16 %v253
  %v614 = vunpack.c.l.b16 %v254
  %v615 = vunpack.c.h.b16 %v254
  %v616 = vunpack.c.l.b16 %v255
  %v617 = vunpack.c.h.b16 %v255
  %v618 = vunpack.c.l.b16 %v256
  %v619 = vunpack.c.l.b16 %v257
  %v620 = vunpack.c.h.b16 %v257
  %v621 = vunpack.c.l.b16 %v258
  %v622 = vunpack.c.h.b16 %v258
  %v623 = vunpack.c.l.b16 %v259
  %v624 = vunpack.c.h.b16 %v259
  %v625 = vunpack.c.l.b16 %v260
  %v626 = vunpack.c.l.b16 %v261
  %v627 = vunpack.c.h.b16 %v261
  %v628 = vunpack.c.l.b16 %v262
  %v629 = vunpack.c.h.b16 %v262
  %v630 = vunpack.c.l.b16 %v263
  %v631 = vunpack.c.h.b16 %v263
  %v632 = vunpack.c.l.b16 %v264
  %v633 = vunpack.c.l.b16 %v265
  %v634 = vunpack.c.h.b16 %v265
  %v635 = vunpack.c.l.b16 %v266
  %v636 = vunpack.c.h.b16 %v266
  %v637 = vunpack.c.l.b16 %v267
  %v638 = vunpack.c.h.b16 %v267
  %v639 = vunpack.c.l.b16 %v268
  %v640 = vunpack.c.l.b16 %v269
  %v641 = vunpack.c.h.b16 %v269
  %v642 = vunpack.c.l.b16 %v270
  %v643 = vunpack.c.h.b16 %v270
  %v644 = vunpack.c.l.b16 %v271
  %v645 = vunpack.c.h.b16 %v271
  %v646 = vunpack.c.l.b16 %v272
  %v647 = vunpack.c.l.b16 %v273
  %v648 = vunpack.c.h.b16 %v273
  %v649 = vunpack.c.l.b16 %v274
  %v650 = vunpack.c.h.b16 %v274
  %v651 = vunpack.c.l.b16 %v275
  %v652 = vunpack.c.h.b16 %v275
  %v653 = vunpack.c.l.b16 %v276
  %v654 = vunpack.c.l.b16 %v277
  %v655 = vunpack.c.h.b16 %v277
  %v656 = vunpack.c.l.b16 %v278
  %v657 = vunpack.c.h.b16 %v278
  %v658 = vunpack.c.l.b16 %v279
  %v659 = vunpack.c.h.b16 %v279
  %v660 = vunpack.c.l.b16 %v280
  %v661 = vunpack.c.l.b16 %v281
  %v662 = vunpack.c.h.b16 %v281
  %v663 = vunpack.c.l.b16 %v282
  %v664 = vunpack.c.h.b16 %v282
  %v665 = vunpack.c.l.b16 %v283
  %v666 = vunpack.c.h.b16 %v283
  %v667 = vunpack.c.l.b16 %v284
  %v668 = vunpack.c.l.b16 %v285
  %v669 = vunpack.c.h.b16 %v285
  %v670 = vunpack.c.l.b16 %v286
  %v671 = vunpack.c.h.b16 %v286
  %v672 = vunpack.c.l.b16 %v287
  %v673 = vunpack.c.h.b16 %v287
  %v674 = vunpack.c.l.b16 %v288
  %v675 = vunpack.c.l.b16 %v289
  %v676 = vunpack.c.h.b16 %v289
  %v677 = vunpack.c.l.b16 %v290
  %v678 = vunpack.c.h.b16 %v290
  %v679 = vunpack.c.l.b16 %v291
  %v680 = vunpack.c.h.b16 %v291
  %v681 = vunpack.c.l.b16 %v292
  %v682 = vpack.c.b16 %v465, %v458
  %v683 = vpack.c.b16 %v466, %v459
  %v684 = vpack.c.b16 %v467, %v460
  %v685 = vpack.c.b16 %v468, %v461
  %v686 = vpack.c.b16 %v469, %v462
  %v687 = vpack.c.b16 %v470, %v463
  %v688 = vpack.c.b16 %v471, %v464
  %v689 = vpack.c.b16 %v479, %v472
  %v690 = vpack.c.b16 %v480, %v473
  %v691 = vpack.c.b16 %v481, %v474
  %v692 = vpack.c.b16 %v482, %v475
  %v693 = vpack.c.b16 %v483, %v476
  %v694 = vpack.c.b16 %v484, %v477
  %v695 = vpack.c.b16 %v485, %v478
  %v696 = vpack.c.b16 %v493, %v486
  %v697 = vpack.c.b16 %v494, %v487
  %v698 = vpack.c.b16 %v495, %v488
  %v699 = vpack.c.b16 %v496, %v489
  %v700 = vpack.c.b16 %v497, %v490
  %v701 = vpack.c.b16 %v498, %v491
  %v702 = vpack.c.b16 %v499, %v492
  %v703 = vpack.c.b16 %v507, %v500
  %v704 = vpack.c.b16 %v508, %v501
  %v705 = vpack.c.b16 %v509, %v502
  %v706 = vpack.c.b16 %v510, %v503
  %v707 = vpack.c.b16 %v511, %v504
  %v708 = vpack.c.b16 %v512, %v505
  %v709 = vpack.c.b16 %v513, %v506
  %v710 = vpack.c.b16 %v521, %v514
  %v711 = vpack.c.b16 %v522, %v515
  %v712 = vpack.c.b16 %v523, %v516
  %v713 = vpack.c.b16 %v524, %v517
  %v714 = vpack.c.b16 %v525, %v518
  %v715 = vpack.c.b16 %v526, %v519
  %v716 = vpack.c.b16 %v527, %v520
  %v717 = vpack.c.b16 %v535, %v528
  %v718 = vpack.c.b16 %v536, %v529
  %v719 = vpack.c.b16 %v537, %v530
  %v720 = vpack.c.b16 %v538, %v531
  %v721 = vpack.c.b16 %v539, %v532
  %v722 = vpack.c.b16 %v540, %v533
  %v723 = vpack.c.b16 %v541, %v534
  %v724 = vpack.c.b16 %v549, %v542
  %v725 = vpack.c.b16 %v550, %v543
  %v726 = vpack.c.b16 %v551, %v544
  %v727 = vpack.c.b16 %v552, %v545
  %v728 = vpack.c.b16 %v553, %v546
  %v729 = vpack.c.b16 %v554, %v547
  %v730 = vpack.c.b16 %v555, %v548
  %v731 = vpack.c.b16 %v563, %v556
  %v732 = vpack.c.b16 %v564, %v557
  %v733 = vpack.c.b16 %v565, %v558
  %v734 = vpack.c.b16 %v566, %v559
  %v735 = vpack.c.b16 %v567, %v560
  %v736 = vpack.c.b16 %v568, %v561
  %v737 = vpack.c.b16 %v569, %v562
  %v738 = vpack.c.b16 %v577, %v570
  %v739 = vpack.c.b16 %v578, %v571
  %v740 = vpack.c.b16 %v579, %v572
  %v741 = vpack.c.b16 %v580, %v573
  %v742 = vpack.c.b16 %v581, %v574
  %v743 = vpack.c.b16 %v582, %v575
  %v744 = vpack.c.b16 %v583, %v576
  %v745 = vpack.c.b16 %v591, %v584
  %v746 = vpack.c.b16 %v592, %v585
  %v747 = vpack.c.b16 %v593, %v586
  %v748 = vpack.c.b16 %v594, %v587
  %v749 = vpack.c.b16 %v595, %v588
  %v750 = vpack.c.b16 %v596, %v589
  %v751 = vpack.c.b16 %v597, %v590
  %v752 = vpack.c.b16 %v605, %v598
  %v753 = vpack.c.b16 %v606, %v599
  %v754 = vpack.c.b16 %v607, %v600
  %v755 = vpack.c.b16 %v608, %v601
  %v756 = vpack.c.b16 %v609, %v602
  %v757 = vpack.c.b16 %v610, %v603
  %v758 = vpack.c.b16 %v611, %v604
  %v759 = vpack.c.b16 %v619, %v612
  %v760 = vpack.c.b16 %v620, %v613
  %v761 = vpack.c.b16 %v621, %v614
  %v762 = vpack.c.b16 %v622, %v615
  %v763 = vpack.c.b16 %v623, %v616
  %v764 = vpack.c.b16 %v624, %v617
  %v765 = vpack.c.b16 %v625, %v618
  %v766 = vpack.c.b16 %v633, %v626
  %v767 = vpack.c.b16 %v634, %v627
  %v768 = vpack.c.b16 %v635, %v628
  %v769 = vpack.c.b16 %v636, %v629
  %v770 = vpack.c.b16 %v637, %v630
  %v771 = vpack.c.b16 %v638, %v631
  %v772 = vpack.c.b16 %v639, %v632
  %v773 = vpack.c.b16 %v647, %v640
  %v774 = vpack.c.b16 %v648, %v641
  %v775 = vpack.c.b16 %v649, %v642
  %v776 = vpack.c.b16 %v650, %v643
  %v777 = vpack.c.b16 %v651, %v644
  %v778 = vpack.c.b16 %v652, %v645
  %v779 = vpack.c.b16 %v653, %v646
  %v780 = vpack.c.b16 %v661, %v654
  %v781 = vpack.c.b16 %v662, %v655
  %v782 = vpack.c.b16 %v663, %v656
  %v783 = vpack.c.b16 %v664, %v657
  %v784 = vpack.c.b16 %v665, %v658
  %v785 = vpack.c.b16 %v666, %v659
  %v786 = vpack.c.b16 %v667, %v660
  %v787 = vpack.c.b16 %v675, %v668
  %v788 = vpack.c.b16 %v676, %v669
  %v789 = vpack.c.b16 %v677, %v670
  %v790 = vpack.c.b16 %v678, %v671
  %v791 = vpack.c.b16 %v679, %v672
  %v792 = vpack.c.b16 %v680, %v673
  %v793 = vpack.c.b16 %v681, %v674
  %906 = vmatprep.subr.bf16.mxu0 %v683
  %907 = vmatpush1.bf16.msra.mxu0 %v682
  %908 = vmatprep.subr.bf16.mxu0 %v690
  %909 = vmatpush1.bf16.msra.mxu0 %v689
  %910 = vmatprep.subr.bf16.mxu0 %v697
  %911 = vmatpush1.bf16.msra.mxu0 %v696
  %912 = vmatprep.subr.bf16.mxu0 %v704
  %913 = vmatpush1.bf16.msra.mxu0 %v703
  %914 = vmatprep.subr.bf16.mxu0 %v711
  %915 = vmatpush1.bf16.msra.mxu0 %v710
  %916 = vmatprep.subr.bf16.mxu0 %v718
  %917 = vmatpush1.bf16.msra.mxu0 %v717
  %918 = vmatprep.subr.bf16.mxu0 %v725
  %919 = vmatpush1.bf16.msra.mxu0 %v724
  %920 = vmatprep.subr.bf16.mxu0 %v732
  %921 = vmatpush1.bf16.msra.mxu0 %v731
  %922 = vmatprep.subr.bf16.mxu0 %v739
  %923 = vmatpush1.bf16.msra.mxu0 %v738
  %924 = vmatprep.subr.bf16.mxu0 %v746
  %925 = vmatpush1.bf16.msra.mxu0 %v745
  %926 = vmatprep.subr.bf16.mxu0 %v753
  %927 = vmatpush1.bf16.msra.mxu0 %v752
  %928 = vmatprep.subr.bf16.mxu0 %v760
  %929 = vmatpush1.bf16.msra.mxu0 %v759
  %930 = vmatprep.subr.bf16.mxu0 %v767
  %931 = vmatpush1.bf16.msra.mxu0 %v766
  %932 = vmatprep.subr.bf16.mxu0 %v774
  %933 = vmatpush1.bf16.msra.mxu0 %v773
  %934 = vmatprep.subr.bf16.mxu0 %v781
  %935 = vmatpush1.bf16.msra.mxu0 %v780
  %936 = vmatprep.subr.bf16.mxu0 %v788
  %937 = vmatpush1.bf16.msra.mxu0 %v787
  %938 = vmatprep.mubr.bf16.mxu0 %v164
  %939 = vmatmul.mubr.bf16.gmra.mrb[0].mxu0 %v163
  %v940 = vpop.f32.mrb[0].mxu0
  %v941 = vadd.f32 %v298, %v940
  %v942 = vpop.f32.mrb[0].mxu0
  %v943 = vadd.f32 %v302, %v942
  %v944 = vpop.f32.mrb[0].mxu0
  %v945 = vpop.f32.mrb[0].mxu0
  %946 = vdwg.mxu0
  %947 = vmatprep.subr.bf16.mxu0 %v685
  %948 = vmatpush1.bf16.msra.mxu0 %v684
  %949 = vmatprep.subr.bf16.mxu0 %v692
  %950 = vmatpush1.bf16.msra.mxu0 %v691
  %951 = vmatprep.subr.bf16.mxu0 %v699
  %952 = vmatpush1.bf16.msra.mxu0 %v698
  %953 = vmatprep.subr.bf16.mxu0 %v706
  %954 = vmatpush1.bf16.msra.mxu0 %v705
  %955 = vmatprep.subr.bf16.mxu0 %v713
  %956 = vmatpush1.bf16.msra.mxu0 %v712
  %957 = vmatprep.subr.bf16.mxu0 %v720
  %958 = vmatpush1.bf16.msra.mxu0 %v719
  %959 = vmatprep.subr.bf16.mxu0 %v727
  %960 = vmatpush1.bf16.msra.mxu0 %v726
  %961 = vmatprep.subr.bf16.mxu0 %v734
  %962 = vmatpush1.bf16.msra.mxu0 %v733
  %963 = vmatprep.subr.bf16.mxu0 %v741
  %964 = vmatpush1.bf16.msra.mxu0 %v740
  %965 = vmatprep.subr.bf16.mxu0 %v748
  %966 = vmatpush1.bf16.msra.mxu0 %v747
  %967 = vmatprep.subr.bf16.mxu0 %v755
  %968 = vmatpush1.bf16.msra.mxu0 %v754
  %969 = vmatprep.subr.bf16.mxu0 %v762
  %970 = vmatpush1.bf16.msra.mxu0 %v761
  %971 = vmatprep.subr.bf16.mxu0 %v769
  %972 = vmatpush1.bf16.msra.mxu0 %v768
  %973 = vmatprep.subr.bf16.mxu0 %v776
  %974 = vmatpush1.bf16.msra.mxu0 %v775
  %975 = vmatprep.subr.bf16.mxu0 %v783
  %976 = vmatpush1.bf16.msra.mxu0 %v782
  %977 = vmatprep.subr.bf16.mxu0 %v790
  %978 = vmatpush1.bf16.msra.mxu0 %v789
  %979 = vmatprep.mubr.bf16.mxu0 %v164
  %980 = vmatmul.mubr.bf16.gmra.mrb[0].mxu0 %v163
  %v981 = vpop.f32.mrb[0].mxu0
  %v982 = vadd.f32 %v306, %v981
  %v983 = vpop.f32.mrb[0].mxu0
  %v984 = vadd.f32 %v310, %v983
  %v985 = vpop.f32.mrb[0].mxu0
  %v986 = vpop.f32.mrb[0].mxu0
  %987 = vdwg.mxu0
  %988 = vmatprep.subr.bf16.mxu0 %v687
  %989 = vmatpush1.bf16.msra.mxu0 %v686
  %990 = vmatprep.subr.bf16.mxu0 %v694
  %991 = vmatpush1.bf16.msra.mxu0 %v693
  %992 = vmatprep.subr.bf16.mxu0 %v701
  %993 = vmatpush1.bf16.msra.mxu0 %v700
  %994 = vmatprep.subr.bf16.mxu0 %v708
  %995 = vmatpush1.bf16.msra.mxu0 %v707
  %996 = vmatprep.subr.bf16.mxu0 %v715
  %997 = vmatpush1.bf16.msra.mxu0 %v714
  %998 = vmatprep.subr.bf16.mxu0 %v722
  %999 = vmatpush1.bf16.msra.mxu0 %v721
  %1000 = vmatprep.subr.bf16.mxu0 %v729
  %1001 = vmatpush1.bf16.msra.mxu0 %v728
  %1002 = vmatprep.subr.bf16.mxu0 %v736
  %1003 = vmatpush1.bf16.msra.mxu0 %v735
  %1004 = vmatprep.subr.bf16.mxu0 %v743
  %1005 = vmatpush1.bf16.msra.mxu0 %v742
  %1006 = vmatprep.subr.bf16.mxu0 %v750
  %1007 = vmatpush1.bf16.msra.mxu0 %v749
  %1008 = vmatprep.subr.bf16.mxu0 %v757
  %1009 = vmatpush1.bf16.msra.mxu0 %v756
  %1010 = vmatprep.subr.bf16.mxu0 %v764
  %1011 = vmatpush1.bf16.msra.mxu0 %v763
  %1012 = vmatprep.subr.bf16.mxu0 %v771
  %1013 = vmatpush1.bf16.msra.mxu0 %v770
  %1014 = vmatprep.subr.bf16.mxu0 %v778
  %1015 = vmatpush1.bf16.msra.mxu0 %v777
  %1016 = vmatprep.subr.bf16.mxu0 %v785
  %1017 = vmatpush1.bf16.msra.mxu0 %v784
  %1018 = vmatprep.subr.bf16.mxu0 %v792
  %1019 = vmatpush1.bf16.msra.mxu0 %v791
  %1020 = vmatprep.mubr.bf16.mxu0 %v164
  %1021 = vmatmul.mubr.bf16.gmra.mrb[0].mxu0 %v163
  %v1022 = vpop.f32.mrb[0].mxu0
  %v1023 = vadd.f32 %v314, %v1022
  %v1024 = vpop.f32.mrb[0].mxu0
  %v1025 = vadd.f32 %v318, %v1024
  %v1026 = vpop.f32.mrb[0].mxu0
  %v1027 = vpop.f32.mrb[0].mxu0
  %1028 = vdwg.mxu0
  %1029 = vmatprep.subr.bf16.mxu0 0
  %1030 = vmatpush1.bf16.msra.mxu0 %v688
  %1031 = vmatprep.subr.bf16.mxu0 0
  %1032 = vmatpush1.bf16.msra.mxu0 %v695
  %1033 = vmatprep.subr.bf16.mxu0 0
  %1034 = vmatpush1.bf16.msra.mxu0 %v702
  %1035 = vmatprep.subr.bf16.mxu0 0
  %1036 = vmatpush1.bf16.msra.mxu0 %v709
  %1037 = vmatprep.subr.bf16.mxu0 0
  %1038 = vmatpush1.bf16.msra.mxu0 %v716
  %1039 = vmatprep.subr.bf16.mxu0 0
  %1040 = vmatpush1.bf16.msra.mxu0 %v723
  %1041 = vmatprep.subr.bf16.mxu0 0
  %1042 = vmatpush1.bf16.msra.mxu0 %v730
  %1043 = vmatprep.subr.bf16.mxu0 0
  %1044 = vmatpush1.bf16.msra.mxu0 %v737
  %1045 = vmatprep.subr.bf16.mxu0 0
  %1046 = vmatpush1.bf16.msra.mxu0 %v744
  %1047 = vmatprep.subr.bf16.mxu0 0
  %1048 = vmatpush1.bf16.msra.mxu0 %v751
  %1049 = vmatprep.subr.bf16.mxu0 0
  %1050 = vmatpush1.bf16.msra.mxu0 %v758
  %1051 = vmatprep.subr.bf16.mxu0 0
  %1052 = vmatpush1.bf16.msra.mxu0 %v765
  %1053 = vmatprep.subr.bf16.mxu0 0
  %1054 = vmatpush1.bf16.msra.mxu0 %v772
  %1055 = vmatprep.subr.bf16.mxu0 0
  %1056 = vmatpush1.bf16.msra.mxu0 %v779
  %1057 = vmatprep.subr.bf16.mxu0 0
  %1058 = vmatpush1.bf16.msra.mxu0 %v786
  %1059 = vmatprep.subr.bf16.mxu0 0
  %1060 = vmatpush1.bf16.msra.mxu0 %v793
  %1061 = vmatprep.mubr.bf16.mxu0 %v164
  %1062 = vmatmul.mubr.bf16.gmra.mrb[0].mxu0 %v163
  %v1063 = vpop.f32.mrb[0].mxu0
  %v1064 = vadd.f32 %v322, %v1063
  %v1065 = vpop.f32.mrb[0].mxu0
  %v1066 = vpop.f32.mrb[0].mxu0
  %v1067 = vpop.f32.mrb[0].mxu0
  %1068 = vdwg.mxu0
  %v1069 = vtanh.pop %v941
  %v1070 = vtanh.pop %v943
  %v1071 = vtanh.pop %v982
  %v1072 = vtanh.pop %v984
  %v1073 = vtanh.pop %v1023
  %v1074 = vtanh.pop %v1025
  %v1075 = vtanh.pop %v1064
  %1076 = vst [vmem:[%s5] sm:$0xff] %v1069
  %1077 = vst [vmem:[%s5 + $0x8] sm:$0xff] %v1070
  %1078 = vst [vmem:[%s5 + $0x10] sm:$0xff] %v1071
  %1079 = vst [vmem:[%s5 + $0x18] sm:$0xff] %v1072
  %1080 = vst [vmem:[%s5 + $0x20] sm:$0xff] %v1073
  %1081 = vst [vmem:[%s5 + $0x28] sm:$0xff] %v1074
  %vm1082 = vcmask 130048
  %1083 = vst.msk [vmem:[%s5 + $0x30] sm:$0xff] %vm1082, %v1075
  // Predicated region
  $region22: #{digit_generator_forward.1} parent=0 // pred_check
    _
  $region23: #{digit_generator_forward.1} parent=0 // pred_check_branch
    %1085 = sbr.rel (0) target = $region25
  $region24: #{digit_generator_forward.1} parent=0 // pred_region
    _
  $region25: #{digit_generator_forward.1} parent=0 // pred_fallthru
    _
  // Predicated region
  $region26: #{digit_generator_forward.1} parent=0 // pred_check
    _
  $region27: #{digit_generator_forward.1} parent=0 // pred_check_branch
    %1087 = sbr.rel (0) target = $region29
  $region28: #{digit_generator_forward.1} parent=0 // pred_region
    _
  $region29: #{digit_generator_forward.1} parent=0 // pred_fallthru
    _

</llo_original>
